<compile_context>
chip_gen: v7x
topology: tpu7x:2x2x1
jax: 0.10.0
libtpu: 0.0.40
codegen_flags: <defaults>
</compile_context>

<pallas_src>
import jax
import jax.numpy as jnp
from jax.experimental import pallas as pl
from jax.experimental.pallas import tpu as pltpu


_VMEM_BUDGET = 10 * 1024 * 1024  # conservative: under v5e's 16 MiB scoped default


def _round_up(x, m):
    return ((x + m - 1) // m) * m


def _largest_tile(dim, cap, quantum=128):
    """Largest multiple-of-`quantum` divisor of `dim` that is <= cap.

    `dim` must be a multiple of `quantum`. Falls back to `quantum`."""
    best = quantum
    cap = max(cap, quantum)
    d = quantum
    limit = min(dim, cap)
    while d <= limit:
        if dim % d == 0:
            best = d
        d += quantum
    return best


# ----------------------------------------------------------------------------
# Kernels
# ----------------------------------------------------------------------------
def _last_head_kernel_fast(x_ref, w_ref, b_ref, o_ref):
    """Single-K-block path: no scratch accumulator, no branches."""
    # In-kernel cast of x to the streaming dtype (VPU, hidden under DMA/MXU).
    x = x_ref[...].astype(w_ref.dtype)
    acc = jax.lax.dot_general(
        x, w_ref[...],
        dimension_numbers=(((1,), (0,)), ((), ())),   # canonical [M,K] x [K,N]
        preferred_element_type=jnp.float32)
    o_ref[...] = (acc + b_ref[...]).astype(o_ref.dtype)


def _last_head_kernel_acc(x_ref, w_ref, b_ref, o_ref, acc_ref):
    """General path: K (=nf) reduction axis last, f32 VMEM accumulator."""
    k = pl.program_id(2)

    @pl.when(k == 0)
    def _init():
        # Fold the bias into the accumulator init (no per-step VPU add pass).
        acc_ref[...] = jnp.broadcast_to(b_ref[...], acc_ref.shape)

    x = x_ref[...].astype(w_ref.dtype)
    acc_ref[...] += jax.lax.dot_general(
        x, w_ref[...],
        dimension_numbers=(((1,), (0,)), ((), ())),
        preferred_element_type=jnp.float32)

    @pl.when(k == pl.num_programs(2) - 1)
    def _store():
        o_ref[...] = acc_ref[...].astype(o_ref.dtype)


# ----------------------------------------------------------------------------
# Parameter prep (one-time, at model-load time)
# ----------------------------------------------------------------------------
def prepare_last_head_params(weight, bias, compute_dtype=jnp.bfloat16):
    """One-time parameter prep (do at load time, NOT per forward call):
      * transpose the PyTorch [T, nf] weight to [nf, T_pad] so the kernel uses
        the canonical MXU contraction (no transposed-rhs feed),
      * pad T to a multiple of 128 -> lane-dense output blocks,
      * cast the weight to the streaming dtype (bf16 default; pass
        compute_dtype=jnp.float32 for bit-closer parity with the f32 Linear).
    nf is left unpadded so the common forward path streams x with no per-call
    pad or cast."""
    target_window, nf = weight.shape
    t_pad = _round_up(target_window, 128)
    w_prep = jnp.pad(weight.astype(compute_dtype).T,
                     ((0, 0), (0, t_pad - target_window)))
    b_prep = jnp.pad(bias.astype(jnp.float32),
                     (0, t_pad - target_window)).reshape(1, t_pad)
    return w_prep, b_prep


# ----------------------------------------------------------------------------
# Forward
# ----------------------------------------------------------------------------
def last_head_apply(x, w_prep, b_prep, target_window, *,
                    vmem_budget=_VMEM_BUDGET, force_general=False):
    """Forward pass: Linear(nf -> target_window) over the last dim of x.
    Dropout(p=0) is the identity.

    x      : [..., nf]      (any number of leading dims)
    w_prep : [nf, T_pad]    from prepare_last_head_params
    b_prep : [1, T_pad]     float32
    """
    # TODO(synk): head_dropout > 0 (training-mode dropout) not implemented; the
    # module default (p=0 / eval) makes Dropout the identity, so it is a no-op.
    *lead, nf = x.shape
    nf_w, t_pad = w_prep.shape
    assert nf_w == nf, (nf_w, nf)
    out_dtype = x.dtype
    xi = x.dtype.itemsize
    wi = w_prep.dtype.itemsize
    oi = jnp.dtype(out_dtype).itemsize

    m = 1
    for d in lead:
        m *= d
    x2d = x.reshape(m, nf)          # contiguous reshape: no copy / cast / pad

    # ---- Fast path: whole-K strip resident, single M tile, grid over T only --
    x_bytes = 2 * m * nf * xi                       # double-buffered x block
    per_tn = 2 * nf * wi + 2 * 4 + 2 * m * oi       # weight + bias + out, per lane
    tn_cap = (vmem_budget - x_bytes) // max(per_tn, 1)

    if tn_cap >= 128 and not force_general:
        tn = _largest_tile(t_pad, tn_cap)
        if t_pad // tn == 1 and t_pad >= 256:
            # v7x megacore: give both TensorCores a T strip.
            tn = _largest_tile(t_pad, t_pad // 2)
        grid = (t_pad // tn,)
        out = pl.pallas_call(
            _last_head_kernel_fast,
            out_shape=jax.ShapeDtypeStruct((m, t_pad), out_dtype),
            grid_spec=pltpu.PrefetchScalarGridSpec(
                num_scalar_prefetch=0,
                grid=grid,
                in_specs=[
                    # Block dims equal to the full array dims are exempt from
                    # the (8,128) rule -> no padding of x needed.
                    pl.BlockSpec((m, nf), lambda j: (0, 0)),     # x (resident)
                    pl.BlockSpec((nf, tn), lambda j: (0, j)),    # weight [nf,T]
                    pl.BlockSpec((1, tn), lambda j: (0, j)),     # bias
                ],
                out_specs=pl.BlockSpec((m, tn), lambda j: (0, j)),
            ),
            compiler_params=pltpu.CompilerParams(
                dimension_semantics=("parallel",)),
        )(x2d, w_prep, b_prep)
        return out[:, :target_window].reshape(*lead, target_window)

    # ---- General fallback: very large m and/or nf -> tiled (M, T, K) grid ----
    nf_pad = _round_up(nf, 128)
    m8 = _round_up(max(m, 1), 8)
    tm = min(256, m8)
    m_pad = _round_up(m8, tm)

    tn = _largest_tile(t_pad, 512)
    if m_pad // tm == 1 and t_pad // tn == 1 and t_pad >= 256:
        tn = _largest_tile(t_pad, t_pad // 2)

    fixed = 2 * tn * 4 + 2 * tm * tn * oi + tm * tn * 4   # bias + out + acc
    per_tk = 2 * tm * xi + 2 * tn * wi
    tk_cap = (vmem_budget - fixed) // max(per_tk, 1)
    tk = _largest_tile(nf_pad, tk_cap)

    # Per-call padding only in this rare fallback.
    x_p = x2d
    if m_pad != m or nf_pad != nf:
        x_p = jnp.pad(x2d, ((0, m_pad - m), (0, nf_pad - nf)))
    w_p = w_prep
    if nf_pad != nf:
        w_p = jnp.pad(w_prep, ((0, nf_pad - nf), (0, 0)))

    grid = (m_pad // tm, t_pad // tn, nf_pad // tk)
    out = pl.pallas_call(
        _last_head_kernel_acc,
        out_shape=jax.ShapeDtypeStruct((m_pad, t_pad), out_dtype),
        grid_spec=pltpu.PrefetchScalarGridSpec(
            num_scalar_prefetch=0,
            grid=grid,
            in_specs=[
                pl.BlockSpec((tm, tk), lambda i, j, k: (i, k)),   # x
                pl.BlockSpec((tk, tn), lambda i, j, k: (k, j)),   # weight [nf,T]
                pl.BlockSpec((1, tn), lambda i, j, k: (0, j)),    # bias
            ],
            out_specs=pl.BlockSpec((tm, tn), lambda i, j, k: (i, j)),
            scratch_shapes=[pltpu.VMEM((tm, tn), jnp.float32)],
        ),
        compiler_params=pltpu.CompilerParams(
            dimension_semantics=("parallel", "parallel", "arbitrary")),
    )(x_p, w_p, b_prep)

    return out[:m, :target_window].reshape(*lead, target_window)


def last_head(x, weight, bias, *, compute_dtype=jnp.bfloat16):
    """Convenience wrapper matching the PyTorch module call.
    NOTE: in a real model, call prepare_last_head_params() once at load time so
    the weight transpose/cast/pad is not repeated every forward call."""
    w_prep, b_prep = prepare_last_head_params(weight, bias, compute_dtype)
    return last_head_apply(x, w_prep, b_prep, weight.shape[0])


if __name__ == "__main__":
    key = jax.random.PRNGKey(0)
    kx, kw, kb, kx2, kw2, kb2 = jax.random.split(key, 6)

    # ---- Test 1: small shapes consistent with the module -------------------
    bs, nvars, nf, target_window = 2, 4, 128, 96
    x = jax.random.normal(kx, (bs, nvars, nf), dtype=jnp.float32)
    weight = jax.random.normal(kw, (target_window, nf), dtype=jnp.float32) * 0.02
    bias = jax.random.normal(kb, (target_window,), dtype=jnp.float32) * 0.02

    w_prep, b_prep = prepare_last_head_params(weight, bias)   # one-time prep
    y = jax.block_until_ready(last_head_apply(x, w_prep, b_prep, target_window))
    assert y.shape == (bs, nvars, target_window)

    # bf16-input / f32-accumulate reference (same numerics as the kernel)
    ref_bf16 = (
        jnp.dot(x.reshape(-1, nf).astype(jnp.bfloat16),
                weight.T.astype(jnp.bfloat16),
                preferred_element_type=jnp.float32)
        + bias.astype(jnp.float32)
    ).reshape(bs, nvars, target_window)
    assert jnp.allclose(y, ref_bf16, atol=2e-3, rtol=2e-3)

    # Exact f32 reference (loose tolerance accounts for bf16 streaming)
    ref_f32 = x @ weight.T + bias
    assert jnp.allclose(y, ref_f32, atol=3e-2, rtol=3e-2)

    # ---- Test 2: non-128 nf, multi-T-strip (megacore split), unpadded x ----
    nf2, tw2 = 300, 720            # T pads to 768 -> 2 T strips; nf stays 300
    x2 = jax.random.normal(kx2, (3, 3, nf2), dtype=jnp.float32)   # M = 9
    w2 = jax.random.normal(kw2, (tw2, nf2), dtype=jnp.float32) * 0.02
    b2 = jax.random.normal(kb2, (tw2,), dtype=jnp.float32) * 0.02
    w2_prep, b2_prep = prepare_last_head_params(w2, b2)
    y2 = jax.block_until_ready(last_head_apply(x2, w2_prep, b2_prep, tw2))
    assert y2.shape == (3, 3, tw2)

    ref2 = (
        jnp.dot(x2.reshape(-1, nf2).astype(jnp.bfloat16),
                w2.T.astype(jnp.bfloat16),
                preferred_element_type=jnp.float32)
        + b2.astype(jnp.float32)
    ).reshape(3, 3, tw2)
    assert jnp.allclose(y2, ref2, atol=2e-3, rtol=2e-3)

    # ---- Test 3: exercise the general (tiled M/T/K accumulator) fallback ---
    y3 = jax.block_until_ready(
        last_head_apply(x2, w2_prep, b2_prep, tw2,
                        force_general=True, vmem_budget=200_000))
    assert y3.shape == (3, 3, tw2)
    assert jnp.allclose(y3, ref2, atol=2e-3, rtol=2e-3)

    print("KERNEL_OK")
</pallas_src>

<mosaic_0001>
module attributes {stable_mosaic.version = 11 : i64} {
  func.func @_last_head_kernel_fast(%arg0: i32, %arg1: memref<8x128xf32, #tpu.memory_space<vmem>>, %arg2: memref<128x128xbf16, #tpu.memory_space<vmem>>, %arg3: memref<1x128xf32, #tpu.memory_space<vmem>>, %arg4: memref<8x128xf32, #tpu.memory_space<vmem>>) attributes {dimension_semantics = [#tpu.dimension_semantics<parallel>], iteration_bounds = array<i64: 1>, scalar_prefetch = 0 : i64, scratch_operands = 0 : i64, tpu.core_type = #tpu.core_type<tc>, window_params = [{pipeline_mode = #tpu.pipeline_mode<synchronous>, transform_indices = @transform_0, window_bounds = array<i64: 8, 128>}, {transform_indices = @transform_1, window_bounds = array<i64: 128, 128>}, {transform_indices = @transform_2, window_bounds = array<i64: 1, 128>}, {transform_indices = @transform_3, window_bounds = array<i64: 8, 128>}]} {
    %c0 = arith.constant 0 : index
    %c0_0 = arith.constant 0 : index
    %0 = vector.load %arg1[%c0, %c0_0] : memref<8x128xf32, #tpu.memory_space<vmem>>, vector<8x128xf32>
    %1 = arith.truncf %0 : vector<8x128xf32> to vector<8x128xbf16>
    %c0_1 = arith.constant 0 : index
    %c0_2 = arith.constant 0 : index
    %2 = vector.load %arg2[%c0_1, %c0_2] : memref<128x128xbf16, #tpu.memory_space<vmem>>, vector<128x128xbf16>
    %cst = arith.constant dense<0.000000e+00> : vector<8x128xf32>
    %3 = tpu.matmul %1, %2, %cst {dimension_numbers = #tpu.dot_dimension_numbers<[1], [0], [0], [1], [0, 0, 1, 1], [], []>} : vector<8x128xbf16>, vector<128x128xbf16>, vector<8x128xf32> -> vector<8x128xf32>
    %c0_3 = arith.constant 0 : index
    %c0_4 = arith.constant 0 : index
    %4 = vector.load %arg3[%c0_3, %c0_4] : memref<1x128xf32, #tpu.memory_space<vmem>>, vector<1x128xf32>
    %5 = vector.broadcast %4 : vector<1x128xf32> to vector<8x128xf32>
    %6 = arith.addf %3, %5 : vector<8x128xf32>
    %c0_5 = arith.constant 0 : index
    %c0_6 = arith.constant 0 : index
    %7 = vector.load %arg4[%c0_5, %c0_6] : memref<8x128xf32, #tpu.memory_space<vmem>>, vector<8x128xf32>
    tpu.vector_store %arg4[%c0_5, %c0_6], %6 {strides = array<i32>} : memref<8x128xf32, #tpu.memory_space<vmem>>, vector<8x128xf32>,
    return
  }
  func.func @transform_0(%arg0: i32) -> (i32, i32) {
    %c0_i32 = arith.constant 0 : i32
    %c0_i32_0 = arith.constant 0 : i32
    %c0_i32_1 = arith.constant 0 : i32
    return %c0_i32, %c0_i32_0 : i32, i32
  }
  func.func @transform_1(%arg0: i32) -> (i32, i32) {
    %c0_i32 = arith.constant 0 : i32
    %c0_i32_0 = arith.constant 0 : i32
    return %c0_i32, %arg0 : i32, i32
  }
  func.func @transform_2(%arg0: i32) -> (i32, i32) {
    %c0_i32 = arith.constant 0 : i32
    %c0_i32_0 = arith.constant 0 : i32
    return %c0_i32, %arg0 : i32, i32
  }
  func.func @transform_3(%arg0: i32) -> (i32, i32) {
    %c0_i32 = arith.constant 0 : i32
    %c0_i32_0 = arith.constant 0 : i32
    return %c0_i32, %arg0 : i32, i32
  }
}

</mosaic_0001>

<llo_original>
// kernel: tpu_custom_call.1
$region0: #{tpu_custom_call.1}
  #allocation0 [shape = 'u32[]', space=smem, size = 0x4, offset = 0x4, fixed_abs, tag = 'smem constant byte address 0x4 - core index']
  #allocation1 [shape = 'u32[144,128]{1,0:T(1,128)}', space=vmem, size = 0x12000, scoped, tag = 'internal scratch']
  %s0 = inlined_call_operand.hbm [shape: f32[8,128], index: 0, kind: input, shape index: {}]
  %s1 = inlined_call_operand.hbm [shape: bf16[128,128], index: 1, kind: input, shape index: {}]
  %s2 = inlined_call_operand.vmem [shape: f32[1,128], index: 2, kind: input, shape index: {}]
  %s3 = inlined_call_operand.hbm [shape: f32[8,128], index: 3, kind: output, shape index: {}]
  %s4 = sld [smem:[#allocation0]]
  $region30: #{tpu_custom_call.1} parent=0
    _
  %s6 = ssub.s32 1, %s4
  %s7 = scalar_select 0, %s6, %s4
  $region1: #{tpu_custom_call.1} parent=0
    #allocation2 [shape = 'u8[4096]{0}', space=vmem, size = 0x1000, scoped, tag = 'input window, operand 0, single buffered']
    #allocation3 [shape = 's32[1]{0}', space=sflag, size = 0x4, scoped, tag = 'scoped memory for tpu_custom_call.1']
    #allocation4 [shape = 's32[1]{0}', space=sflag, size = 0x4, scoped, tag = 'scoped memory for tpu_custom_call.1']
    #allocation5 [shape = 'u8[32768]{0}', space=vmem, size = 0x8000, scoped, tag = 'input window, operand 1, single buffered']
    #allocation6 [shape = 's32[1]{0}', space=sflag, size = 0x4, scoped, tag = 'scoped memory for tpu_custom_call.1']
    #allocation7 [shape = 'u8[4096]{0}', space=vmem, size = 0x1000, scoped, tag = 'output window, operand 0, single buffered']
    %8 = vsyncpa [#allocation3], 0
    %9 = vsyncpa [#allocation6], 0
    %10 = vsyncpa [#allocation4], 0
    // Predicated region
    $region2: #{tpu_custom_call.1} parent=1 // pred_check
      _
    $region3: #{tpu_custom_call.1} parent=1 // pred_check_branch
      %12 = sbr.rel (0) target = $region5
    $region4: #{tpu_custom_call.1} parent=1 // pred_region
      %s14 = ssub.s32 128, 128
      %15 = vsyncadd [#allocation3], %s14
      %s17 = sshll.u32 [#allocation2], 4
      %s18 = int_to_ptr.vmem [resolvable:$true] %s17
      %20 = dma.hbm_to_vmem [thread:$0]  %s0, 128, %s18, [#allocation3]
    $region5: #{tpu_custom_call.1} parent=1 // pred_fallthru
      _
    // Predicated region
    $region6: #{tpu_custom_call.1} parent=1 // pred_check
      _
    $region7: #{tpu_custom_call.1} parent=1 // pred_check_branch
      %22 = sbr.rel (0) target = $region9
    $region8: #{tpu_custom_call.1} parent=1 // pred_region
      %s24 = ssub.s32 1024, 1024
      %25 = vsyncadd [#allocation6], %s24
      %s26 = sshll.u32 [#allocation5], 4
      %s27 = int_to_ptr.vmem [resolvable:$true] %s26
      %32 = dma.hbm_to_vmem [thread:$0]  %s1, 1024, %s27, [#allocation6], 64, 64, 4
    $region9: #{tpu_custom_call.1} parent=1 // pred_fallthru
      _
    // Predicated region
    $region10: #{tpu_custom_call.1} parent=1 // pred_check
      _
    $region11: #{tpu_custom_call.1} parent=1 // pred_check_branch
      %34 = sbr.rel (0) target = $region13
    $region12: #{tpu_custom_call.1} parent=1 // pred_region
      _
    $region13: #{tpu_custom_call.1} parent=1 // pred_fallthru
      _
    // Predicated region
    $region14: #{tpu_custom_call.1} parent=1 // pred_check
      _
    $region15: #{tpu_custom_call.1} parent=1 // pred_check_branch
      %36 = sbr.rel (0) target = $region17
    $region16: #{tpu_custom_call.1} parent=1 // pred_region
      %37 = dma.done [#allocation3], 128
    $region17: #{tpu_custom_call.1} parent=1 // pred_fallthru
      _
    // Predicated region
    $region18: #{tpu_custom_call.1} parent=1 // pred_check
      _
    $region19: #{tpu_custom_call.1} parent=1 // pred_check_branch
      %39 = sbr.rel (0) target = $region21
    $region20: #{tpu_custom_call.1} parent=1 // pred_region
      %40 = dma.done [#allocation6], 1024
    $region21: #{tpu_custom_call.1} parent=1 // pred_fallthru
      _
    %v42 = vld [vmem:[#allocation2] sm:$0xff]
    %v43 = vpack.c.bf16 %v42, %v42
    %v44 = vld [vmem:[#allocation5] sm:$0xf]
    %v45 = vld [vmem:[#allocation5 + $0x4] sm:$0xf]
    %v46 = vld [vmem:[#allocation5 + $0x8] sm:$0xf]
    %v47 = vld [vmem:[#allocation5 + $0xc] sm:$0xf]
    %v48 = vld [vmem:[#allocation5 + $0x10] sm:$0xf]
    %v49 = vld [vmem:[#allocation5 + $0x14] sm:$0xf]
    %v50 = vld [vmem:[#allocation5 + $0x18] sm:$0xf]
    %v51 = vld [vmem:[#allocation5 + $0x1c] sm:$0xf]
    %v52 = vld [vmem:[#allocation5 + $0x20] sm:$0xf]
    %v53 = vld [vmem:[#allocation5 + $0x24] sm:$0xf]
    %v54 = vld [vmem:[#allocation5 + $0x28] sm:$0xf]
    %v55 = vld [vmem:[#allocation5 + $0x2c] sm:$0xf]
    %v56 = vld [vmem:[#allocation5 + $0x30] sm:$0xf]
    %v57 = vld [vmem:[#allocation5 + $0x34] sm:$0xf]
    %v58 = vld [vmem:[#allocation5 + $0x38] sm:$0xf]
    %v59 = vld [vmem:[#allocation5 + $0x3c] sm:$0xf]
    %v60 = vld [vmem:[%s2] sm:$0x1]
    %v62 = vlaneseq
    %v63 = vshrl.u32 %v62, 7
    %v64 = vsub.s32 0, %v63
    %v65 = vrot.slane %v60, %v64
    %v83 = vunpack.c.l.b16 %v44
    %v84 = vunpack.c.l.b16 %v45
    %v85 = vunpack.c.l.b16 %v46
    %v86 = vunpack.c.l.b16 %v47
    %v87 = vunpack.c.l.b16 %v48
    %v88 = vunpack.c.l.b16 %v49
    %v89 = vunpack.c.l.b16 %v50
    %v90 = vunpack.c.l.b16 %v51
    %v91 = vunpack.c.l.b16 %v52
    %v92 = vunpack.c.l.b16 %v53
    %v93 = vunpack.c.l.b16 %v54
    %v94 = vunpack.c.l.b16 %v55
    %v95 = vunpack.c.l.b16 %v56
    %v96 = vunpack.c.l.b16 %v57
    %v97 = vunpack.c.l.b16 %v58
    %v98 = vunpack.c.l.b16 %v59
    %v99 = vpack.c.b16 %v84, %v83
    %v100 = vpack.c.b16 %v86, %v85
    %v101 = vpack.c.b16 %v88, %v87
    %v102 = vpack.c.b16 %v90, %v89
    %v103 = vpack.c.b16 %v92, %v91
    %v104 = vpack.c.b16 %v94, %v93
    %v105 = vpack.c.b16 %v96, %v95
    %v106 = vpack.c.b16 %v98, %v97
    %115 = vmatprep.subr.bf16.mxu0 0
    %116 = vmatpush1.bf16.msra.mxu0 %v99
    %117 = vmatprep.subr.bf16.mxu0 0
    %118 = vmatpush1.bf16.msra.mxu0 %v100
    %119 = vmatprep.subr.bf16.mxu0 0
    %120 = vmatpush1.bf16.msra.mxu0 %v101
    %121 = vmatprep.subr.bf16.mxu0 0
    %122 = vmatpush1.bf16.msra.mxu0 %v102
    %123 = vmatprep.subr.bf16.mxu0 0
    %124 = vmatpush1.bf16.msra.mxu0 %v103
    %125 = vmatprep.subr.bf16.mxu0 0
    %126 = vmatpush1.bf16.msra.mxu0 %v104
    %127 = vmatprep.subr.bf16.mxu0 0
    %128 = vmatpush1.bf16.msra.mxu0 %v105
    %129 = vmatprep.subr.bf16.mxu0 0
    %130 = vmatpush1.bf16.msra.mxu0 %v106
    %131 = vmatprep.subr.bf16.mxu0 0
    %132 = vmatpush1.bf16.msra.mxu0 0
    %133 = vmatprep.subr.bf16.mxu0 0
    %134 = vmatpush1.bf16.msra.mxu0 0
    %135 = vmatprep.subr.bf16.mxu0 0
    %136 = vmatpush1.bf16.msra.mxu0 0
    %137 = vmatprep.subr.bf16.mxu0 0
    %138 = vmatpush1.bf16.msra.mxu0 0
    %139 = vmatprep.subr.bf16.mxu0 0
    %140 = vmatpush1.bf16.msra.mxu0 0
    %141 = vmatprep.subr.bf16.mxu0 0
    %142 = vmatpush1.bf16.msra.mxu0 0
    %143 = vmatprep.subr.bf16.mxu0 0
    %144 = vmatpush1.bf16.msra.mxu0 0
    %145 = vmatprep.subr.bf16.mxu0 0
    %146 = vmatpush1.bf16.msra.mxu0 0
    %147 = vmatprep.mubr.bf16.mxu0 0
    %148 = vmatmul.mubr.bf16.gmra.mrb[0].mxu0 %v43
    %v149 = vpop.f32.mrb[0].mxu0
    %v150 = vadd.f32 %v65, %v149
    %v151 = vpop.f32.mrb[0].mxu0
    %v152 = vpop.f32.mrb[0].mxu0
    %v153 = vpop.f32.mrb[0].mxu0
    %154 = vdwg.mxu0
    %155 = vst [vmem:[#allocation7] sm:$0xff] %v150
    // Predicated region
    $region22: #{tpu_custom_call.1} parent=1 // pred_check
      _
    $region23: #{tpu_custom_call.1} parent=1 // pred_check_branch
      %157 = sbr.rel (0) target = $region25
    $region24: #{tpu_custom_call.1} parent=1 // pred_region
      %s159 = ssub.s32 128, 128
      %160 = vsyncadd [#allocation4], %s159
      %s162 = sshll.u32 [#allocation7], 4
      %s163 = int_to_ptr.vmem [resolvable:$true] %s162
      %165 = dma.vmem_to_hbm [thread:$0]  %s163, 128, %s3, [#allocation4]
    $region25: #{tpu_custom_call.1} parent=1 // pred_fallthru
      _
    // Predicated region
    $region26: #{tpu_custom_call.1} parent=1 // pred_check
      _
    $region27: #{tpu_custom_call.1} parent=1 // pred_check_branch
      %167 = sbr.rel (0) target = $region29
    $region28: #{tpu_custom_call.1} parent=1 // pred_region
      %168 = dma.done [#allocation4], 128
    $region29: #{tpu_custom_call.1} parent=1 // pred_fallthru
      _
    %169 = vsyncpa [#allocation3], 1
    %170 = vsyncpa [#allocation6], 1
    %171 = vsyncpa [#allocation4], 1

</llo_original>
